<compile_context>
chip_gen: v5e
topology: v5e:2x2
jax: 0.10.0
libtpu: 0.0.40
codegen_flags: <defaults>
</compile_context>

<pallas_src>
import jax
import jax.numpy as jnp
from jax import lax
from jax.experimental import pallas as pl
from jax.experimental.pallas import tpu as pltpu


def _round_up(n, m):
    return ((n + m - 1) // m) * m


def mlp_kernel(x_ref, w1_ref, b1_ref, w2_ref, b2_ref, w3_ref, b3_ref,
               sign_ref, o_ref):
    """One batch tile.

    x_ref    : (tb, in_dim)  batch-major, exactly as x sits in HBM
    w*_ref   : PyTorch Linear weights (out_features, in_features)
    b*_ref   : biases as column vectors (out_features, 1)
    sign_ref : (2, 1) = [[+1], [-1]]
    o_ref    : (2, tb)       feature-major output tile

    Activations are kept feature-major (features on sublanes, batch on the
    128-wide lane axis) so every elementwise op and the 2-row store are
    lane-dense.  For a ragged last tile the pad columns hold unspecified data
    (exp of garbage may be inf/nan there); columns are independent and the
    out-of-bounds write-back is masked by Pallas, so this is harmless — but do
    NOT add any reduction across the batch (lane) axis inside this kernel.
    """
    x = x_ref[...]                                             # (tb, in_dim)

    # Layer 1: (h1, in) @ (tb, in)^T -> (h1, tb).  Contracting the minor dims
    # of both operands lets the MXU absorb the 3-wide transpose — no wrapper
    # x.T pass and no explicit in-kernel transpose op.
    h = lax.dot_general(w1_ref[...], x, (((1,), (1,)), ((), ())),
                        preferred_element_type=jnp.float32) + b1_ref[...]
    h = jnp.maximum(h, 0.0)        # ReLU (Dropout == identity in eval mode)

    h = jnp.dot(w2_ref[...], h, preferred_element_type=jnp.float32) + b2_ref[...]
    h = jnp.maximum(h, 0.0)

    y = jnp.dot(w3_ref[...], h, preferred_element_type=jnp.float32) + b3_ref[...]

    # numerically stable softplus: log(1+exp(y)) = max(y,0) + log1p(exp(-|y|))
    sp = jnp.maximum(y, 0.0) + jnp.log1p(jnp.exp(-jnp.abs(y)))

    # row 0 -> eps = +softplus, row 1 -> kappa = -softplus
    o_ref[...] = sp * sign_ref[...]


def nn_forward(x, params, *, block_batch=8192, feature_major_out=False):
    """x: (batch, input_dim) float32.  params in PyTorch Linear layout:
    (w1 (h1,in), b1 (h1,), w2 (h2,h1), b2 (h2,), w3 (2,h2), b3 (2,)).

    Returns (batch, 2) by default; with feature_major_out=True returns
    (2, batch) and skips the final transpose pass entirely.
    """
    w1, b1, w2, b2, w3, b3 = params
    batch, in_dim = x.shape
    out_dim = w3.shape[0]
    assert out_dim == 2, "forward() semantics require exactly 2 outputs"

    x = x.astype(jnp.float32)
    w1 = jnp.asarray(w1, jnp.float32)
    w2 = jnp.asarray(w2, jnp.float32)
    w3 = jnp.asarray(w3, jnp.float32)
    b1c = jnp.asarray(b1, jnp.float32).reshape(-1, 1)
    b2c = jnp.asarray(b2, jnp.float32).reshape(-1, 1)
    b3c = jnp.asarray(b3, jnp.float32).reshape(-1, 1)
    sign = jnp.array([[1.0], [-1.0]], jnp.float32)

    # ---- batch tile selection -------------------------------------------
    if batch <= 128:
        tb = batch                              # single full-dim tile
    else:
        tb = min(block_batch, _round_up(batch, 128))
        if tb >= batch:
            # Would be a single grid step: split in two so ("parallel",)
            # can shard the batch across v7x's two TensorCores.
            tb = _round_up(pl.cdiv(batch, 2), 128)
    num_tiles = pl.cdiv(batch, tb)              # ragged last block is fine

    def const_spec(shape):
        # Full-array block, same block index every step -> stays VMEM-resident.
        return pl.BlockSpec(shape, lambda i: (0, 0))

    out_t = pl.pallas_call(
        mlp_kernel,
        out_shape=jax.ShapeDtypeStruct((out_dim, batch), jnp.float32),
        grid=(num_tiles,),
        in_specs=[
            pl.BlockSpec((tb, in_dim), lambda i: (i, 0)),   # x tile (natural layout)
            const_spec(w1.shape), const_spec(b1c.shape),
            const_spec(w2.shape), const_spec(b2c.shape),
            const_spec(w3.shape), const_spec(b3c.shape),
            const_spec(sign.shape),
        ],
        out_specs=pl.BlockSpec((out_dim, tb), lambda i: (0, i)),
        compiler_params=pltpu.CompilerParams(
            dimension_semantics=("parallel",),
            vmem_limit_bytes=32 * 1024 * 1024),
    )(x, w1, b1c, w2, b2c, w3, b3c, sign)

    if feature_major_out:
        return out_t                            # (2, batch): zero extra HBM passes
    # Single small transpose pass back to the PyTorch convention (batch, 2).
    return out_t.T


def init_params(key, input_dim, hidden_dims, output_dim):
    """PyTorch nn.Linear default init, weights stored as (out, in)."""
    dims = [input_dim] + list(hidden_dims) + [output_dim]
    params = []
    keys = jax.random.split(key, 2 * (len(dims) - 1))
    for i in range(len(dims) - 1):
        fan_in = dims[i]
        bound = 1.0 / (fan_in ** 0.5)
        w = jax.random.uniform(keys[2 * i], (dims[i + 1], dims[i]),
                               jnp.float32, -bound, bound)
        b = jax.random.uniform(keys[2 * i + 1], (dims[i + 1],),
                               jnp.float32, -bound, bound)
        params += [w, b]
    return tuple(params)


if __name__ == "__main__":
    # 3 inputs -> hidden [32, 32] -> 2 outputs
    input_dim, hidden_dims, output_dim = 3, (32, 32), 2

    key = jax.random.PRNGKey(0)
    k_x, k_p, k_x2 = jax.random.split(key, 3)
    params = init_params(k_p, input_dim, hidden_dims, output_dim)

    def reference(xx):
        w1, b1, w2, b2, w3, b3 = params
        h = jnp.maximum(xx @ w1.T + b1, 0.0)   # eval-mode dropout == identity
        h = jnp.maximum(h @ w2.T + b2, 0.0)
        y = h @ w3.T + b3
        return jnp.stack([jax.nn.softplus(y[:, 0]),
                          -jax.nn.softplus(y[:, 1])], axis=1)

    fwd = jax.jit(lambda xx: nn_forward(xx, params))

    # small single-tile case (batch = 8)
    x_small = jax.random.normal(k_x, (8, input_dim), jnp.float32)
    out_small = jax.block_until_ready(fwd(x_small))
    assert out_small.shape == (8, output_dim)
    assert jnp.allclose(out_small, reference(x_small), atol=1e-4, rtol=1e-4), \
        "mismatch vs JAX reference (small batch)"

    # multi-tile + ragged last block case (batch = 1000 -> 2 grid steps)
    x_big = jax.random.normal(k_x2, (1000, input_dim), jnp.float32)
    out_big = jax.block_until_ready(fwd(x_big))
    assert out_big.shape == (1000, output_dim)
    assert jnp.allclose(out_big, reference(x_big), atol=1e-4, rtol=1e-4), \
        "mismatch vs JAX reference (multi-tile / ragged batch)"

    print("KERNEL_OK")
</pallas_src>

<mosaic_0001>
module attributes {stable_mosaic.version = 11 : i64} {
  func.func @mlp_kernel(%arg0: i32, %arg1: memref<8x3xf32, #tpu.memory_space<vmem>>, %arg2: memref<32x3xf32, #tpu.memory_space<vmem>>, %arg3: memref<32x1xf32, #tpu.memory_space<vmem>>, %arg4: memref<32x32xf32, #tpu.memory_space<vmem>>, %arg5: memref<32x1xf32, #tpu.memory_space<vmem>>, %arg6: memref<2x32xf32, #tpu.memory_space<vmem>>, %arg7: memref<2x1xf32, #tpu.memory_space<vmem>>, %arg8: memref<2x1xf32, #tpu.memory_space<vmem>>, %arg9: memref<2x8xf32, #tpu.memory_space<vmem>>) attributes {dimension_semantics = [#tpu.dimension_semantics<parallel>], iteration_bounds = array<i64: 1>, scalar_prefetch = 0 : i64, scratch_operands = 0 : i64, tpu.core_type = #tpu.core_type<tc>, window_params = [{transform_indices = @transform_0, window_bounds = array<i64: 8, 3>}, {pipeline_mode = #tpu.pipeline_mode<synchronous>, transform_indices = @transform_1, window_bounds = array<i64: 32, 3>}, {pipeline_mode = #tpu.pipeline_mode<synchronous>, transform_indices = @transform_2, window_bounds = array<i64: 32, 1>}, {pipeline_mode = #tpu.pipeline_mode<synchronous>, transform_indices = @transform_3, window_bounds = array<i64: 32, 32>}, {pipeline_mode = #tpu.pipeline_mode<synchronous>, transform_indices = @transform_4, window_bounds = array<i64: 32, 1>}, {pipeline_mode = #tpu.pipeline_mode<synchronous>, transform_indices = @transform_5, window_bounds = array<i64: 2, 32>}, {pipeline_mode = #tpu.pipeline_mode<synchronous>, transform_indices = @transform_6, window_bounds = array<i64: 2, 1>}, {pipeline_mode = #tpu.pipeline_mode<synchronous>, transform_indices = @transform_7, window_bounds = array<i64: 2, 1>}, {transform_indices = @transform_8, window_bounds = array<i64: 2, 8>}]} {
    %c0 = arith.constant 0 : index
    %c0_0 = arith.constant 0 : index
    %0 = vector.load %arg1[%c0, %c0_0] : memref<8x3xf32, #tpu.memory_space<vmem>>, vector<8x3xf32>
    %c0_1 = arith.constant 0 : index
    %c0_2 = arith.constant 0 : index
    %1 = vector.load %arg2[%c0_1, %c0_2] : memref<32x3xf32, #tpu.memory_space<vmem>>, vector<32x3xf32>
    %cst = arith.constant dense<0.000000e+00> : vector<32x8xf32>
    %2 = tpu.matmul %1, %0, %cst {dimension_numbers = #tpu.dot_dimension_numbers<[1], [1], [0], [0], [0, 0, 1, 0], [], []>} : vector<32x3xf32>, vector<8x3xf32>, vector<32x8xf32> -> vector<32x8xf32>
    %c0_3 = arith.constant 0 : index
    %c0_4 = arith.constant 0 : index
    %3 = vector.load %arg3[%c0_3, %c0_4] : memref<32x1xf32, #tpu.memory_space<vmem>>, vector<32x1xf32>
    %4 = vector.broadcast %3 : vector<32x1xf32> to vector<32x8xf32>
    %5 = arith.addf %2, %4 : vector<32x8xf32>
    %cst_5 = arith.constant 0.000000e+00 : f32
    %6 = vector.broadcast %cst_5 : f32 to vector<32x8xf32>
    %7 = arith.maximumf %5, %6 : vector<32x8xf32>
    %c0_6 = arith.constant 0 : index
    %c0_7 = arith.constant 0 : index
    %8 = vector.load %arg4[%c0_6, %c0_7] : memref<32x32xf32, #tpu.memory_space<vmem>>, vector<32x32xf32>
    %cst_8 = arith.constant dense<0.000000e+00> : vector<32x8xf32>
    %9 = tpu.matmul %8, %7, %cst_8 {dimension_numbers = #tpu.dot_dimension_numbers<[1], [0], [0], [1], [0, 0, 1, 1], [], []>} : vector<32x32xf32>, vector<32x8xf32>, vector<32x8xf32> -> vector<32x8xf32>
    %c0_9 = arith.constant 0 : index
    %c0_10 = arith.constant 0 : index
    %10 = vector.load %arg5[%c0_9, %c0_10] : memref<32x1xf32, #tpu.memory_space<vmem>>, vector<32x1xf32>
    %11 = vector.broadcast %10 : vector<32x1xf32> to vector<32x8xf32>
    %12 = arith.addf %9, %11 : vector<32x8xf32>
    %cst_11 = arith.constant 0.000000e+00 : f32
    %13 = vector.broadcast %cst_11 : f32 to vector<32x8xf32>
    %14 = arith.maximumf %12, %13 : vector<32x8xf32>
    %c0_12 = arith.constant 0 : index
    %c0_13 = arith.constant 0 : index
    %15 = vector.load %arg6[%c0_12, %c0_13] : memref<2x32xf32, #tpu.memory_space<vmem>>, vector<2x32xf32>
    %cst_14 = arith.constant dense<0.000000e+00> : vector<2x8xf32>
    %16 = tpu.matmul %15, %14, %cst_14 {dimension_numbers = #tpu.dot_dimension_numbers<[1], [0], [0], [1], [0, 0, 1, 1], [], []>} : vector<2x32xf32>, vector<32x8xf32>, vector<2x8xf32> -> vector<2x8xf32>
    %c0_15 = arith.constant 0 : index
    %c0_16 = arith.constant 0 : index
    %17 = vector.load %arg7[%c0_15, %c0_16] : memref<2x1xf32, #tpu.memory_space<vmem>>, vector<2x1xf32>
    %18 = vector.broadcast %17 : vector<2x1xf32> to vector<2x8xf32>
    %19 = arith.addf %16, %18 : vector<2x8xf32>
    %cst_17 = arith.constant 0.000000e+00 : f32
    %20 = vector.broadcast %cst_17 : f32 to vector<2x8xf32>
    %21 = arith.maximumf %19, %20 : vector<2x8xf32>
    %22 = math.absf %19 : vector<2x8xf32>
    %cst_18 = arith.constant 0.000000e+00 : f32
    %23 = vector.broadcast %cst_18 : f32 to vector<2x8xf32>
    %24 = arith.subf %23, %22 : vector<2x8xf32>
    %25 = math.exp %24 : vector<2x8xf32>
    %26 = math.log1p %25 : vector<2x8xf32>
    %27 = arith.addf %21, %26 : vector<2x8xf32>
    %c0_19 = arith.constant 0 : index
    %c0_20 = arith.constant 0 : index
    %28 = vector.load %arg8[%c0_19, %c0_20] : memref<2x1xf32, #tpu.memory_space<vmem>>, vector<2x1xf32>
    %29 = vector.broadcast %28 : vector<2x1xf32> to vector<2x8xf32>
    %30 = arith.mulf %27, %29 : vector<2x8xf32>
    %c0_21 = arith.constant 0 : index
    %c0_22 = arith.constant 0 : index
    %31 = vector.load %arg9[%c0_21, %c0_22] : memref<2x8xf32, #tpu.memory_space<vmem>>, vector<2x8xf32>
    tpu.vector_store %arg9[%c0_21, %c0_22], %30 {strides = array<i32>} : memref<2x8xf32, #tpu.memory_space<vmem>>, vector<2x8xf32>,
    return
  }
  func.func @transform_0(%arg0: i32) -> (i32, i32) {
    %c0_i32 = arith.constant 0 : i32
    %c0_i32_0 = arith.constant 0 : i32
    return %arg0, %c0_i32 : i32, i32
  }
  func.func @transform_1(%arg0: i32) -> (i32, i32) {
    %c0_i32 = arith.constant 0 : i32
    %c0_i32_0 = arith.constant 0 : i32
    %c0_i32_1 = arith.constant 0 : i32
    return %c0_i32, %c0_i32_0 : i32, i32
  }
  func.func @transform_2(%arg0: i32) -> (i32, i32) {
    %c0_i32 = arith.constant 0 : i32
    %c0_i32_0 = arith.constant 0 : i32
    %c0_i32_1 = arith.constant 0 : i32
    return %c0_i32, %c0_i32_0 : i32, i32
  }
  func.func @transform_3(%arg0: i32) -> (i32, i32) {
    %c0_i32 = arith.constant 0 : i32
    %c0_i32_0 = arith.constant 0 : i32
    %c0_i32_1 = arith.constant 0 : i32
    return %c0_i32, %c0_i32_0 : i32, i32
  }
  func.func @transform_4(%arg0: i32) -> (i32, i32) {
    %c0_i32 = arith.constant 0 : i32
    %c0_i32_0 = arith.constant 0 : i32
    %c0_i32_1 = arith.constant 0 : i32
    return %c0_i32, %c0_i32_0 : i32, i32
  }
  func.func @transform_5(%arg0: i32) -> (i32, i32) {
    %c0_i32 = arith.constant 0 : i32
    %c0_i32_0 = arith.constant 0 : i32
    %c0_i32_1 = arith.constant 0 : i32
    return %c0_i32, %c0_i32_0 : i32, i32
  }
  func.func @transform_6(%arg0: i32) -> (i32, i32) {
    %c0_i32 = arith.constant 0 : i32
    %c0_i32_0 = arith.constant 0 : i32
    %c0_i32_1 = arith.constant 0 : i32
    return %c0_i32, %c0_i32_0 : i32, i32
  }
  func.func @transform_7(%arg0: i32) -> (i32, i32) {
    %c0_i32 = arith.constant 0 : i32
    %c0_i32_0 = arith.constant 0 : i32
    %c0_i32_1 = arith.constant 0 : i32
    return %c0_i32, %c0_i32_0 : i32, i32
  }
  func.func @transform_8(%arg0: i32) -> (i32, i32) {
    %c0_i32 = arith.constant 0 : i32
    %c0_i32_0 = arith.constant 0 : i32
    return %c0_i32, %arg0 : i32, i32
  }
}

</mosaic_0001>

<llo_original>
// kernel: _lambda_.1
$region0: #{_lambda_.1}
  #allocation0 [shape = 'u32[]', space=smem, size = 0x4, offset = 0x4, fixed_abs, tag = 'smem constant byte address 0x4 - core index']
  #allocation1 [shape = 'u32[72,128]{1,0:T(1,128)}', space=vmem, size = 0x9000, scoped, tag = 'internal scratch']
  %s0 = inlined_call_operand.vmem [shape: f32[8,3], index: 0, kind: input, shape index: {}]
  %s1 = inlined_call_operand.hbm [shape: f32[32,3], index: 1, kind: input, shape index: {}]
  %s2 = inlined_call_operand.hbm [shape: f32[32,1], index: 2, kind: input, shape index: {}]
  %s3 = inlined_call_operand.hbm [shape: f32[32,32], index: 3, kind: input, shape index: {}]
  %s4 = inlined_call_operand.hbm [shape: f32[32,1], index: 4, kind: input, shape index: {}]
  %s5 = inlined_call_operand.vmem [shape: f32[2,32], index: 5, kind: input, shape index: {}]
  %s6 = inlined_call_operand.vmem [shape: f32[2,1], index: 6, kind: input, shape index: {}]
  %s7 = inlined_call_operand.vmem [shape: f32[2,1], index: 7, kind: input, shape index: {}]
  %s8 = inlined_call_operand.hbm [shape: f32[2,8], index: 8, kind: output, shape index: {}]
  %s9 = sld [smem:[#allocation0]]
  $region58: #{_lambda_.1} parent=0
    _
  %s11 = ssub.s32 1, %s9
  %s12 = scalar_select 0, %s11, %s9
  $region1: #{_lambda_.1} parent=0
    #allocation2 [shape = 'u8[16384]{0}', space=vmem, size = 0x4000, scoped, tag = 'input window, operand 1, single buffered']
    #allocation3 [shape = 's32[1]{0}', space=sflag, size = 0x4, scoped, tag = 'scoped memory for _lambda_.1']
    #allocation4 [shape = 's32[1]{0}', space=sflag, size = 0x4, scoped, tag = 'scoped memory for _lambda_.1']
    #allocation5 [shape = 'u8[16384]{0}', space=vmem, size = 0x4000, scoped, tag = 'input window, operand 2, single buffered']
    #allocation6 [shape = 's32[1]{0}', space=sflag, size = 0x4, scoped, tag = 'scoped memory for _lambda_.1']
    #allocation7 [shape = 'u8[16384]{0}', space=vmem, size = 0x4000, scoped, tag = 'input window, operand 3, single buffered']
    #allocation8 [shape = 'u8[16384]{0}', space=vmem, size = 0x4000, scoped, tag = 'input window, operand 4, single buffered']
    #allocation9 [shape = 's32[1]{0}', space=sflag, size = 0x4, scoped, tag = 'scoped memory for _lambda_.1']
    #allocation10 [shape = 'u8[1024]{0}', space=vmem, size = 0x400, scoped, tag = 'output window, operand 0, single buffered']
    %13 = vsyncpa [#allocation3], 0
    %14 = vsyncpa [#allocation6], 0
    %15 = vsyncpa [#allocation9], 0
    %16 = vsyncpa [#allocation4], 0
    // Predicated region
    $region2: #{_lambda_.1} parent=1 // pred_check
      _
    $region3: #{_lambda_.1} parent=1 // pred_check_branch
      %18 = sbr.rel (0) target = $region5
    $region4: #{_lambda_.1} parent=1 // pred_region
      _
    $region5: #{_lambda_.1} parent=1 // pred_fallthru
      _
    // Predicated region
    $region6: #{_lambda_.1} parent=1 // pred_check
      _
    $region7: #{_lambda_.1} parent=1 // pred_check_branch
      %20 = sbr.rel (0) target = $region9
    $region8: #{_lambda_.1} parent=1 // pred_region
      %22 = vsyncadd [#allocation3], 0
      %s23 = sshll.u32 %s1, 4
      %s24 = int_to_ptr.hbm [resolvable:$true] %s23
      %s25 = sshll.u32 [#allocation2], 4
      %s26 = int_to_ptr.vmem [resolvable:$true] %s25
      %31 = dma.hbm_to_vmem [thread:$0]  %s24, 512, %s26, [#allocation3], 128, 128, 8
    $region9: #{_lambda_.1} parent=1 // pred_fallthru
      _
    // Predicated region
    $region10: #{_lambda_.1} parent=1 // pred_check
      _
    $region11: #{_lambda_.1} parent=1 // pred_check_branch
      %33 = sbr.rel (0) target = $region13
    $region12: #{_lambda_.1} parent=1 // pred_region
      %35 = vsyncadd [#allocation6], 0
      %s36 = sshll.u32 %s2, 4
      %s37 = int_to_ptr.hbm [resolvable:$true] %s36
      %s38 = sshll.u32 [#allocation5], 4
      %s39 = int_to_ptr.vmem [resolvable:$true] %s38
      %44 = dma.hbm_to_vmem [thread:$0]  %s37, 512, %s39, [#allocation6], 128, 128, 8
    $region13: #{_lambda_.1} parent=1 // pred_fallthru
      _
    // Predicated region
    $region14: #{_lambda_.1} parent=1 // pred_check
      _
    $region15: #{_lambda_.1} parent=1 // pred_check_branch
      %46 = sbr.rel (0) target = $region17
    $region16: #{_lambda_.1} parent=1 // pred_region
      %48 = vsyncadd [#allocation6], 0
      %s49 = sshll.u32 %s3, 4
      %s50 = int_to_ptr.hbm [resolvable:$true] %s49
      %s51 = sshll.u32 [#allocation7], 4
      %s52 = int_to_ptr.vmem [resolvable:$true] %s51
      %57 = dma.hbm_to_vmem [thread:$0]  %s50, 512, %s52, [#allocation6], 128, 128, 8
    $region17: #{_lambda_.1} parent=1 // pred_fallthru
      _
    // Predicated region
    $region18: #{_lambda_.1} parent=1 // pred_check
      _
    $region19: #{_lambda_.1} parent=1 // pred_check_branch
      %59 = sbr.rel (0) target = $region21
    $region20: #{_lambda_.1} parent=1 // pred_region
      %61 = vsyncadd [#allocation9], 0
      %s62 = sshll.u32 %s4, 4
      %s63 = int_to_ptr.hbm [resolvable:$true] %s62
      %s64 = sshll.u32 [#allocation8], 4
      %s65 = int_to_ptr.vmem [resolvable:$true] %s64
      %70 = dma.hbm_to_vmem [thread:$0]  %s63, 512, %s65, [#allocation9], 128, 128, 8
    $region21: #{_lambda_.1} parent=1 // pred_fallthru
      _
    // Predicated region
    $region22: #{_lambda_.1} parent=1 // pred_check
      _
    $region23: #{_lambda_.1} parent=1 // pred_check_branch
      %72 = sbr.rel (0) target = $region25
    $region24: #{_lambda_.1} parent=1 // pred_region
      _
    $region25: #{_lambda_.1} parent=1 // pred_fallthru
      _
    // Predicated region
    $region26: #{_lambda_.1} parent=1 // pred_check
      _
    $region27: #{_lambda_.1} parent=1 // pred_check_branch
      %74 = sbr.rel (0) target = $region29
    $region28: #{_lambda_.1} parent=1 // pred_region
      _
    $region29: #{_lambda_.1} parent=1 // pred_fallthru
      _
    // Predicated region
    $region30: #{_lambda_.1} parent=1 // pred_check
      _
    $region31: #{_lambda_.1} parent=1 // pred_check_branch
      %76 = sbr.rel (0) target = $region33
    $region32: #{_lambda_.1} parent=1 // pred_region
      _
    $region33: #{_lambda_.1} parent=1 // pred_fallthru
      _
    // Predicated region
    $region34: #{_lambda_.1} parent=1 // pred_check
      _
    $region35: #{_lambda_.1} parent=1 // pred_check_branch
      %78 = sbr.rel (0) target = $region37
    $region36: #{_lambda_.1} parent=1 // pred_region
      %80 = dma.done [#allocation3], 512
    $region37: #{_lambda_.1} parent=1 // pred_fallthru
      _
    // Predicated region
    $region38: #{_lambda_.1} parent=1 // pred_check
      _
    $region39: #{_lambda_.1} parent=1 // pred_check_branch
      %82 = sbr.rel (0) target = $region41
    $region40: #{_lambda_.1} parent=1 // pred_region
      %84 = dma.done [#allocation6], 512
    $region41: #{_lambda_.1} parent=1 // pred_fallthru
      _
    // Predicated region
    $region42: #{_lambda_.1} parent=1 // pred_check
      _
    $region43: #{_lambda_.1} parent=1 // pred_check_branch
      %86 = sbr.rel (0) target = $region45
    $region44: #{_lambda_.1} parent=1 // pred_region
      %88 = dma.done [#allocation6], 512
    $region45: #{_lambda_.1} parent=1 // pred_fallthru
      _
    // Predicated region
    $region46: #{_lambda_.1} parent=1 // pred_check
      _
    $region47: #{_lambda_.1} parent=1 // pred_check_branch
      %90 = sbr.rel (0) target = $region49
    $region48: #{_lambda_.1} parent=1 // pred_region
      %92 = dma.done [#allocation9], 512
    $region49: #{_lambda_.1} parent=1 // pred_fallthru
      _
    %v93 = vld [vmem:[%s0] sm:$0xff]
    %v94 = vld [vmem:[#allocation2] sm:$0xff]
    %v95 = vld [vmem:[#allocation2 + $0x8] sm:$0xff]
    %v96 = vld [vmem:[#allocation2 + $0x10] sm:$0xff]
    %v97 = vld [vmem:[#allocation2 + $0x18] sm:$0xff]
    %v98 = vld [vmem:[#allocation5] sm:$0xff]
    %v99 = vld [vmem:[#allocation5 + $0x8] sm:$0xff]
    %v100 = vld [vmem:[#allocation5 + $0x10] sm:$0xff]
    %v101 = vld [vmem:[#allocation5 + $0x18] sm:$0xff]
    %103 = vset.pattern.permute.xlu0 0
    %104 = vperm.xlu0 %103, %v98
    %v105 = vpop.permute.xlu0 %104
    %108 = vset.pattern.permute.xlu0 0
    %109 = vperm.xlu0 %108, %v99
    %v110 = vpop.permute.xlu0 %109
    %113 = vset.pattern.permute.xlu0 0
    %114 = vperm.xlu0 %113, %v100
    %v115 = vpop.permute.xlu0 %114
    %118 = vset.pattern.permute.xlu0 0
    %119 = vperm.xlu0 %118, %v101
    %v120 = vpop.permute.xlu0 %119
    %vm122 = vcmask 23552
    %v124 = vsel %vm122, %v94, 0
    %v127 = vsel %vm122, %v95, 0
    %v130 = vsel %vm122, %v96, 0
    %v133 = vsel %vm122, %v97, 0
    %v136 = vsel %vm122, %v93, 0
    %138 = vmatpush.xpose.msra.mxu0 0.0
    %139 = vmatpush.xpose.msra.mxu0 0.0
    %140 = vmatpush.xpose.msra.mxu0 0.0
    %141 = vmatpush.xpose.msra.mxu0 0.0
    %142 = vmatpush.xpose.msra.mxu0 0.0
    %143 = vmatpush.xpose.msra.mxu0 0.0
    %144 = vmatpush.xpose.msra.mxu0 0.0
    %145 = vmatpush.xpose.msra.mxu0 0.0
    %146 = vmatpush.xpose.msra.mxu0 0.0
    %147 = vmatpush.xpose.msra.mxu0 0.0
    %148 = vmatpush.xpose.msra.mxu0 0.0
    %149 = vmatpush.xpose.msra.mxu0 0.0
    %150 = vmatpush.xpose.msra.mxu0 0.0
    %151 = vmatpush.xpose.msra.mxu0 0.0
    %152 = vmatpush.xpose.msra.mxu0 0.0
    %153 = vmatpush.xpose.msra.mxu0 %v136
    %154 = vmatmul.f32.gmra.mxu0 %v124
    %v155 = vpop.f32.mrf.mxu0
    %v156 = vadd.f32 %v105, %v155
    %157 = vmatmul.f32.gmra.mxu0 %v127
    %v158 = vpop.f32.mrf.mxu0
    %v159 = vadd.f32 %v110, %v158
    %160 = vmatmul.f32.gmra.mxu0 %v130
    %v161 = vpop.f32.mrf.mxu0
    %v162 = vadd.f32 %v115, %v161
    %163 = vmatmul.f32.gmra.mxu0 %v133
    %v164 = vpop.f32.mrf.mxu0
    %v165 = vadd.f32 %v120, %v164
    %166 = vdwg.mxu0
    %v167 = vmax.f32 %v156, 0.0
    %v168 = vmax.f32 %v159, 0.0
    %v169 = vmax.f32 %v162, 0.0
    %v170 = vmax.f32 %v165, 0.0
    %v171 = vld [vmem:[#allocation7] sm:$0xff]
    %v172 = vld [vmem:[#allocation7 + $0x8] sm:$0xff]
    %v173 = vld [vmem:[#allocation7 + $0x10] sm:$0xff]
    %v174 = vld [vmem:[#allocation7 + $0x18] sm:$0xff]
    %v175 = vld [vmem:[#allocation8] sm:$0xff]
    %v176 = vld [vmem:[#allocation8 + $0x8] sm:$0xff]
    %v177 = vld [vmem:[#allocation8 + $0x10] sm:$0xff]
    %v178 = vld [vmem:[#allocation8 + $0x18] sm:$0xff]
    %180 = vset.pattern.permute.xlu0 0
    %181 = vperm.xlu0 %180, %v175
    %v182 = vpop.permute.xlu0 %181
    %185 = vset.pattern.permute.xlu0 0
    %186 = vperm.xlu0 %185, %v176
    %v187 = vpop.permute.xlu0 %186
    %190 = vset.pattern.permute.xlu0 0
    %191 = vperm.xlu0 %190, %v177
    %v192 = vpop.permute.xlu0 %191
    %195 = vset.pattern.permute.xlu0 0
    %196 = vperm.xlu0 %195, %v178
    %v197 = vpop.permute.xlu0 %196
    %vm199 = vcmask 261120
    %v201 = vsel %vm199, %v171, 0
    %v204 = vsel %vm199, %v172, 0
    %v207 = vsel %vm199, %v173, 0
    %v210 = vsel %vm199, %v174, 0
    %212 = vmatpush.msra.mxu0 0.0
    %213 = vmatpush.msra.mxu0 0.0
    %214 = vmatpush.msra.mxu0 0.0
    %215 = vmatpush.msra.mxu0 0.0
    %216 = vmatpush.msra.mxu0 0.0
    %217 = vmatpush.msra.mxu0 0.0
    %218 = vmatpush.msra.mxu0 0.0
    %219 = vmatpush.msra.mxu0 0.0
    %220 = vmatpush.msra.mxu0 0.0
    %221 = vmatpush.msra.mxu0 0.0
    %222 = vmatpush.msra.mxu0 0.0
    %223 = vmatpush.msra.mxu0 0.0
    %224 = vmatpush.msra.mxu0 %v170
    %225 = vmatpush.msra.mxu0 %v169
    %226 = vmatpush.msra.mxu0 %v168
    %227 = vmatpush.msra.mxu0 %v167
    %228 = vmatmul.f32.gmra.mxu0 %v201
    %v229 = vpop.f32.mrf.mxu0
    %v230 = vadd.f32 %v182, %v229
    %231 = vmatmul.f32.gmra.mxu0 %v204
    %v232 = vpop.f32.mrf.mxu0
    %v233 = vadd.f32 %v187, %v232
    %234 = vmatmul.f32.gmra.mxu0 %v207
    %v235 = vpop.f32.mrf.mxu0
    %v236 = vadd.f32 %v192, %v235
    %237 = vmatmul.f32.gmra.mxu0 %v210
    %v238 = vpop.f32.mrf.mxu0
    %v239 = vadd.f32 %v197, %v238
    %240 = vdwg.mxu0
    %v241 = vmax.f32 %v230, 0.0
    %v242 = vmax.f32 %v233, 0.0
    %v243 = vmax.f32 %v236, 0.0
    %v244 = vmax.f32 %v239, 0.0
    %v245 = vld [vmem:[%s5] sm:$0x3]
    %v246 = vld [vmem:[%s6] sm:$0x3]
    %248 = vset.pattern.permute.xlu0 0
    %249 = vperm.xlu0 %248, %v246
    %v250 = vpop.permute.xlu0 %249
    %v253 = vsel %vm199, %v245, 0
    %255 = vmatpush.msra.mxu0 0.0
    %256 = vmatpush.msra.mxu0 0.0
    %257 = vmatpush.msra.mxu0 0.0
    %258 = vmatpush.msra.mxu0 0.0
    %259 = vmatpush.msra.mxu0 0.0
    %260 = vmatpush.msra.mxu0 0.0
    %261 = vmatpush.msra.mxu0 0.0
    %262 = vmatpush.msra.mxu0 0.0
    %263 = vmatpush.msra.mxu0 0.0
    %264 = vmatpush.msra.mxu0 0.0
    %265 = vmatpush.msra.mxu0 0.0
    %266 = vmatpush.msra.mxu0 0.0
    %267 = vmatpush.msra.mxu0 %v244
    %268 = vmatpush.msra.mxu0 %v243
    %269 = vmatpush.msra.mxu0 %v242
    %270 = vmatpush.msra.mxu0 %v241
    %271 = vmatmul.f32.gmra.mxu0 %v253
    %v272 = vpop.f32.mrf.mxu0
    %v273 = vadd.f32 %v250, %v272
    %274 = vdwg.mxu0
    %v275 = vmax.f32 %v273, 0.0
    %v276 = vand.u32 2147483647, %v273
    %v277 = vsub.f32 0.0, %v276
    %v278 = vmul.f32 %v277, 1.442695
    %v279 = vpow.pop %v278
    %v280 = vadd.f32 %v279, 1.0
    %v281 = vlog2.pop %v280
    %v282 = vmul.f32 %v281, 0.6931472
    %v283 = vmul.f32 -0.5, %v279
    %v284 = vadd.f32 %v283, 1.0
    %v285 = vmul.f32 %v284, %v279
    %v286 = vand.u32 2147483647, %v279
    %vm287 = vcmp.lt.f32.partialorder %v286, 0.0004427343
    %v288 = vsel %vm287, %v285, %v282
    %v289 = vadd.f32 %v275, %v288
    %v290 = vld [vmem:[%s7] sm:$0x3]
    %292 = vset.pattern.permute.xlu0 0
    %293 = vperm.xlu0 %292, %v290
    %v294 = vpop.permute.xlu0 %293
    %v296 = vmul.f32 %v289, %v294
    %vm297 = vcmask 58368
    %298 = vst.msk [vmem:[#allocation10] sm:$0x3] %vm297, %v296
    // Predicated region
    $region50: #{_lambda_.1} parent=1 // pred_check
      _
    $region51: #{_lambda_.1} parent=1 // pred_check_branch
      %300 = sbr.rel (0) target = $region53
    $region52: #{_lambda_.1} parent=1 // pred_region
      %302 = vsyncadd [#allocation4], 0
      %s304 = sshll.u32 [#allocation10], 4
      %s305 = int_to_ptr.vmem [resolvable:$true] %s304
      %s306 = sshll.u32 %s8, 4
      %s307 = int_to_ptr.hbm [resolvable:$true] %s306
      %309 = dma.vmem_to_hbm [thread:$0]  %s305, 32, %s307, [#allocation4]
    $region53: #{_lambda_.1} parent=1 // pred_fallthru
      _
    // Predicated region
    $region54: #{_lambda_.1} parent=1 // pred_check
      _
    $region55: #{_lambda_.1} parent=1 // pred_check_branch
      %311 = sbr.rel (0) target = $region57
    $region56: #{_lambda_.1} parent=1 // pred_region
      %313 = dma.done [#allocation4], 32
    $region57: #{_lambda_.1} parent=1 // pred_fallthru
      _
    %314 = vsyncpa [#allocation3], 1
    %315 = vsyncpa [#allocation6], 1
    %316 = vsyncpa [#allocation9], 1
    %317 = vsyncpa [#allocation4], 1

</llo_original>
